<compile_context>
chip_gen: v5e
topology: v5e:2x2
jax: 0.10.0
libtpu: 0.0.40
codegen_flags: <defaults>
</compile_context>

<pallas_src>
import functools

import jax
import jax.numpy as jnp
from jax.experimental import pallas as pl
from jax.experimental.pallas import tpu as pltpu

TAU = 5.0
_LANE = 128
_MIN_ROWS = 32        # sublane padding: keeps bf16/int8 blocks on native tiles
_MAX_TILE = 1024      # batch-tile upper bound (few MiB VMEM, well under scoped limit)


def _round_up(v, m):
    return ((v + m - 1) // m) * m


def _block_select_kernel(x_ref, w1bd_ref, b1_ref, w2f_ref, b2_ref, noise_ref,
                         out_ref):
    # ---- stage 1: all patches at once via the block-diagonal weight ---------
    h = jnp.dot(x_ref[...], w1bd_ref[...],
                preferred_element_type=jnp.float32)          # [TB, P*H] f32
    h = jnp.maximum(h + b1_ref[...], 0.0)                    # f32 bias + relu

    # ---- stage 2: fc over the flattened [P*H] features -----------------------
    logits = jnp.dot(h.astype(w2f_ref.dtype), w2f_ref[...],
                     preferred_element_type=jnp.float32)      # [TB, NBpad] f32
    z = logits + b2_ref[...] + noise_ref[...]

    # gumbel_sigmoid(hard=True, tau=5): forward value is the hard mask.
    # sigmoid((logits+noise)/tau) > 0.5  <=>  (logits + noise) > 0
    out_ref[...] = (z > 0.0).astype(out_ref.dtype)


def prepare_block_select_params(w1, b1, w2, b2, num_patches,
                                compute_dtype=jnp.bfloat16):
    """One-time parameter re-layout (hoisted out of the per-call path).

    w1: [H, E], b1: [H], w2: [NB, P*H], b2: [NB].
    Returns (w1bd, b1t, w2f, b2p) ready for block_select_forward.
    """
    H, E = w1.shape
    NB = w2.shape[0]
    P = num_patches
    PH = P * H
    NBp = _round_up(max(NB, _LANE), _LANE)                    # lane-dense output width

    # Per-patch shared Linear as one block-diagonal matmul:
    #   W1bd[p*E + e, p*H + k] = W1[k, e]
    # NOTE: W1bd is O(P^2 * E * H); for large P switch stage 1 to a K-tiled
    # reduction over patch groups instead of this dense kron (v7x VMEM guard).
    w1bd = jnp.kron(jnp.eye(P, dtype=jnp.float32),
                    jnp.transpose(w1).astype(jnp.float32)).astype(compute_dtype)
    b1t = jnp.tile(b1.astype(jnp.float32), P).reshape(1, PH)             # [1, P*H]
    w2f = jnp.pad(jnp.transpose(w2),
                  ((0, 0), (0, NBp - NB))).astype(compute_dtype)          # [P*H, NBp]
    b2p = jnp.pad(b2.astype(jnp.float32), (0, NBp - NB)).reshape(1, NBp)  # [1, NBp]
    return w1bd, b1t, w2f, b2p


def _choose_batch_tiling(batch):
    if batch <= _MIN_ROWS:
        return _round_up(max(batch, 1), _MIN_ROWS), 1
    # >=2 tiles so v7x's two TensorCores both get work; 512-1024-row tiles
    # keep per-step overhead negligible while staying far under scoped VMEM.
    n_tiles = max(2, pl.cdiv(batch, _MAX_TILE))
    tb = _round_up(pl.cdiv(batch, n_tiles), _MIN_ROWS)
    return tb, n_tiles


@jax.jit
def block_select_forward(params, x, noise):
    """params from prepare_block_select_params; x: [B, P, E]; noise: [B, NB] (g1-g2)."""
    w1bd, b1t, w2f, b2p = params
    B = x.shape[0]
    PE, PH = w1bd.shape
    NBp = w2f.shape[1]
    NB = noise.shape[1]

    tb, n_tiles = _choose_batch_tiling(B)
    Bpad = tb * n_tiles

    x2 = x.reshape(B, PE).astype(w1bd.dtype)                  # bf16 MXU operand
    if Bpad != B:
        x2 = jnp.pad(x2, ((0, Bpad - B), (0, 0)))
    noise_p = jnp.pad(noise.astype(jnp.float32),
                      ((0, Bpad - B), (0, NBp - NB)))          # f32 noise, lane-padded

    out = pl.pallas_call(
        _block_select_kernel,
        out_shape=jax.ShapeDtypeStruct((Bpad, NBp), jnp.int8),
        grid=(n_tiles,),
        in_specs=[
            pl.BlockSpec((tb, PE), lambda i: (i, 0)),     # x (batch tile, bf16)
            # Grid-invariant operands stay resident; pipeline_mode=pl.Buffered(1)
            # could halve their VMEM footprint if P grows large.
            pl.BlockSpec((PE, PH), lambda i: (0, 0)),     # W1 block-diag (bf16)
            pl.BlockSpec((1, PH), lambda i: (0, 0)),      # b1 tiled over patches (f32)
            pl.BlockSpec((PH, NBp), lambda i: (0, 0)),    # W2 flat, lane-padded (bf16)
            pl.BlockSpec((1, NBp), lambda i: (0, 0)),     # b2 lane-padded (f32)
            pl.BlockSpec((tb, NBp), lambda i: (i, 0)),    # gumbel noise (f32)
        ],
        out_specs=pl.BlockSpec((tb, NBp), lambda i: (i, 0)),
        compiler_params=pltpu.CompilerParams(
            dimension_semantics=("parallel",)),
    )(x2, w1bd, b1t, w2f, b2p, noise_p)

    return out[:B, :NB].astype(jnp.float32)


def _reference_forward(x, w1, b1, w2, b2, noise, compute_dtype=jnp.bfloat16):
    # Module semantics: relu(mlp(x)); flatten; fc; gumbel_sigmoid(hard=True, tau=5).
    # Matmul operands are cast to compute_dtype to mirror the kernel's MXU precision.
    B = x.shape[0]
    h = jnp.einsum("bpe,he->bph", x.astype(compute_dtype), w1.astype(compute_dtype),
                   preferred_element_type=jnp.float32)
    h = jax.nn.relu(h + b1)
    flat = h.reshape(B, -1).astype(compute_dtype)
    logits = jnp.dot(flat, jnp.transpose(w2).astype(compute_dtype),
                     preferred_element_type=jnp.float32) + b2
    y_soft = jax.nn.sigmoid((logits + noise) / TAU)
    return (y_soft > 0.5).astype(jnp.float32)


if __name__ == "__main__":
    # Small shapes consistent with the module
    B, P, E, H, NB = 2, 8, 32, 32, 8   # batch, num_patches, num_embeddings, hidden_sz, num_blocks

    key = jax.random.PRNGKey(0)
    kx, kw1, kb1, kw2, kb2, kn1, kn2 = jax.random.split(key, 7)

    x = jax.random.normal(kx, (B, P, E), dtype=jnp.float32)

    # Deterministic parameter init (uniform, Linear-like fan-in scaling)
    w1 = jax.random.uniform(kw1, (H, E), jnp.float32, -1.0, 1.0) / jnp.sqrt(E)
    b1 = jax.random.uniform(kb1, (H,), jnp.float32, -1.0, 1.0) / jnp.sqrt(E)
    w2 = jax.random.uniform(kw2, (NB, H * P), jnp.float32, -1.0, 1.0) / jnp.sqrt(H * P)
    b2 = jax.random.uniform(kb2, (NB,), jnp.float32, -1.0, 1.0) / jnp.sqrt(H * P)

    # Gumbel noise g1 - g2 with g = -log(Exp(1)) (matches torch exponential_().log() * -1)
    g1 = -jnp.log(jax.random.exponential(kn1, (B, NB), dtype=jnp.float32))
    g2 = -jnp.log(jax.random.exponential(kn2, (B, NB), dtype=jnp.float32))
    noise = g1 - g2

    # One-time parameter re-layout (perf: hoisted out of the forward call).
    params = prepare_block_select_params(w1, b1, w2, b2, num_patches=P)

    out = block_select_forward(params, x, noise)
    out = jax.block_until_ready(out)

    ref = _reference_forward(x, w1, b1, w2, b2, noise)
    assert out.shape == (B, NB) and out.dtype == jnp.float32
    assert jnp.array_equal(out, ref), "Pallas kernel mismatch vs reference"

    print("KERNEL_OK")
</pallas_src>

<mosaic_0001>
module attributes {stable_mosaic.version = 11 : i64} {
  func.func @_block_select_kernel(%arg0: i32, %arg1: memref<32x256xbf16, #tpu.memory_space<vmem>>, %arg2: memref<256x256xbf16, #tpu.memory_space<vmem>>, %arg3: memref<1x256xf32, #tpu.memory_space<vmem>>, %arg4: memref<256x128xbf16, #tpu.memory_space<vmem>>, %arg5: memref<1x128xf32, #tpu.memory_space<vmem>>, %arg6: memref<32x128xf32, #tpu.memory_space<vmem>>, %arg7: memref<32x128xi8, #tpu.memory_space<vmem>>) attributes {dimension_semantics = [#tpu.dimension_semantics<parallel>], iteration_bounds = array<i64: 1>, scalar_prefetch = 0 : i64, scratch_operands = 0 : i64, tpu.core_type = #tpu.core_type<tc>, window_params = [{transform_indices = @transform_0, window_bounds = array<i64: 32, 256>}, {pipeline_mode = #tpu.pipeline_mode<synchronous>, transform_indices = @transform_1, window_bounds = array<i64: 256, 256>}, {pipeline_mode = #tpu.pipeline_mode<synchronous>, transform_indices = @transform_2, window_bounds = array<i64: 1, 256>}, {pipeline_mode = #tpu.pipeline_mode<synchronous>, transform_indices = @transform_3, window_bounds = array<i64: 256, 128>}, {pipeline_mode = #tpu.pipeline_mode<synchronous>, transform_indices = @transform_4, window_bounds = array<i64: 1, 128>}, {transform_indices = @transform_5, window_bounds = array<i64: 32, 128>}, {transform_indices = @transform_6, window_bounds = array<i64: 32, 128>}]} {
    %c0 = arith.constant 0 : index
    %c0_0 = arith.constant 0 : index
    %0 = vector.load %arg1[%c0, %c0_0] : memref<32x256xbf16, #tpu.memory_space<vmem>>, vector<32x256xbf16>
    %c0_1 = arith.constant 0 : index
    %c0_2 = arith.constant 0 : index
    %1 = vector.load %arg2[%c0_1, %c0_2] : memref<256x256xbf16, #tpu.memory_space<vmem>>, vector<256x256xbf16>
    %cst = arith.constant dense<0.000000e+00> : vector<32x256xf32>
    %2 = tpu.matmul %0, %1, %cst {dimension_numbers = #tpu.dot_dimension_numbers<[1], [0], [0], [1], [0, 0, 1, 1], [], []>} : vector<32x256xbf16>, vector<256x256xbf16>, vector<32x256xf32> -> vector<32x256xf32>
    %c0_3 = arith.constant 0 : index
    %c0_4 = arith.constant 0 : index
    %3 = vector.load %arg3[%c0_3, %c0_4] : memref<1x256xf32, #tpu.memory_space<vmem>>, vector<1x256xf32>
    %4 = vector.broadcast %3 : vector<1x256xf32> to vector<32x256xf32>
    %5 = arith.addf %2, %4 : vector<32x256xf32>
    %cst_5 = arith.constant 0.000000e+00 : f32
    %6 = vector.broadcast %cst_5 : f32 to vector<32x256xf32>
    %7 = arith.maximumf %5, %6 : vector<32x256xf32>
    %8 = arith.truncf %7 : vector<32x256xf32> to vector<32x256xbf16>
    %c0_6 = arith.constant 0 : index
    %c0_7 = arith.constant 0 : index
    %9 = vector.load %arg4[%c0_6, %c0_7] : memref<256x128xbf16, #tpu.memory_space<vmem>>, vector<256x128xbf16>
    %cst_8 = arith.constant dense<0.000000e+00> : vector<32x128xf32>
    %10 = tpu.matmul %8, %9, %cst_8 {dimension_numbers = #tpu.dot_dimension_numbers<[1], [0], [0], [1], [0, 0, 1, 1], [], []>} : vector<32x256xbf16>, vector<256x128xbf16>, vector<32x128xf32> -> vector<32x128xf32>
    %c0_9 = arith.constant 0 : index
    %c0_10 = arith.constant 0 : index
    %11 = vector.load %arg5[%c0_9, %c0_10] : memref<1x128xf32, #tpu.memory_space<vmem>>, vector<1x128xf32>
    %12 = vector.broadcast %11 : vector<1x128xf32> to vector<32x128xf32>
    %13 = arith.addf %10, %12 : vector<32x128xf32>
    %c0_11 = arith.constant 0 : index
    %c0_12 = arith.constant 0 : index
    %14 = vector.load %arg6[%c0_11, %c0_12] : memref<32x128xf32, #tpu.memory_space<vmem>>, vector<32x128xf32>
    %15 = arith.addf %13, %14 : vector<32x128xf32>
    %cst_13 = arith.constant 0.000000e+00 : f32
    %16 = vector.broadcast %cst_13 : f32 to vector<32x128xf32>
    %17 = arith.cmpf ogt, %15, %16 : vector<32x128xf32>
    %18 = arith.extui %17 : vector<32x128xi1> to vector<32x128xi8>
    %c0_14 = arith.constant 0 : index
    %c0_15 = arith.constant 0 : index
    %19 = vector.load %arg7[%c0_14, %c0_15] : memref<32x128xi8, #tpu.memory_space<vmem>>, vector<32x128xi8>
    tpu.vector_store %arg7[%c0_14, %c0_15], %18 {strides = array<i32>} : memref<32x128xi8, #tpu.memory_space<vmem>>, vector<32x128xi8>,
    return
  }
  func.func @transform_0(%arg0: i32) -> (i32, i32) {
    %c0_i32 = arith.constant 0 : i32
    %c0_i32_0 = arith.constant 0 : i32
    return %arg0, %c0_i32 : i32, i32
  }
  func.func @transform_1(%arg0: i32) -> (i32, i32) {
    %c0_i32 = arith.constant 0 : i32
    %c0_i32_0 = arith.constant 0 : i32
    %c0_i32_1 = arith.constant 0 : i32
    return %c0_i32, %c0_i32_0 : i32, i32
  }
  func.func @transform_2(%arg0: i32) -> (i32, i32) {
    %c0_i32 = arith.constant 0 : i32
    %c0_i32_0 = arith.constant 0 : i32
    %c0_i32_1 = arith.constant 0 : i32
    return %c0_i32, %c0_i32_0 : i32, i32
  }
  func.func @transform_3(%arg0: i32) -> (i32, i32) {
    %c0_i32 = arith.constant 0 : i32
    %c0_i32_0 = arith.constant 0 : i32
    %c0_i32_1 = arith.constant 0 : i32
    return %c0_i32, %c0_i32_0 : i32, i32
  }
  func.func @transform_4(%arg0: i32) -> (i32, i32) {
    %c0_i32 = arith.constant 0 : i32
    %c0_i32_0 = arith.constant 0 : i32
    %c0_i32_1 = arith.constant 0 : i32
    return %c0_i32, %c0_i32_0 : i32, i32
  }
  func.func @transform_5(%arg0: i32) -> (i32, i32) {
    %c0_i32 = arith.constant 0 : i32
    %c0_i32_0 = arith.constant 0 : i32
    return %arg0, %c0_i32 : i32, i32
  }
  func.func @transform_6(%arg0: i32) -> (i32, i32) {
    %c0_i32 = arith.constant 0 : i32
    %c0_i32_0 = arith.constant 0 : i32
    return %arg0, %c0_i32 : i32, i32
  }
}

</mosaic_0001>

<llo_original>
// kernel: block_select_forward.1
$region0: #{block_select_forward.1}
  #allocation0 [shape = 'u32[]', space=smem, size = 0x4, offset = 0x4, fixed_abs, tag = 'smem constant byte address 0x4 - core index']
  #allocation1 [shape = 'u32[72,128]{1,0:T(1,128)}', space=vmem, size = 0x9000, scoped, tag = 'internal scratch']
  %s0 = inlined_call_operand.vmem [shape: bf16[32,256], index: 0, kind: input, shape index: {}]
  %s1 = inlined_call_operand.hbm [shape: bf16[256,256], index: 1, kind: input, shape index: {}]
  %s2 = inlined_call_operand.vmem [shape: f32[1,256], index: 2, kind: input, shape index: {}]
  %s3 = inlined_call_operand.hbm [shape: bf16[256,128], index: 3, kind: input, shape index: {}]
  %s4 = inlined_call_operand.vmem [shape: f32[1,128], index: 4, kind: input, shape index: {}]
  %s5 = inlined_call_operand.vmem [shape: f32[32,128], index: 5, kind: input, shape index: {}]
  %s6 = inlined_call_operand.vmem [shape: s8[32,128], index: 6, kind: output, shape index: {}]
  %s7 = sld [smem:[#allocation0]]
  $region42: #{block_select_forward.1} parent=0
    _
  %s9 = ssub.s32 1, %s7
  %s10 = scalar_select 0, %s9, %s7
  $region1: #{block_select_forward.1} parent=0
    #allocation2 [shape = 'u8[131072]{0}', space=vmem, size = 0x20000, scoped, tag = 'input window, operand 1, single buffered']
    #allocation3 [shape = 's32[1]{0}', space=sflag, size = 0x4, scoped, tag = 'scoped memory for block_select_forward.1']
    #allocation4 [shape = 'u8[65536]{0}', space=vmem, size = 0x10000, scoped, tag = 'input window, operand 3, single buffered']
    #allocation5 [shape = 's32[1]{0}', space=sflag, size = 0x4, scoped, tag = 'scoped memory for block_select_forward.1']
    %11 = vsyncpa [#allocation3], 0
    %12 = vsyncpa [#allocation5], 0
    // Predicated region
    $region2: #{block_select_forward.1} parent=1 // pred_check
      _
    $region3: #{block_select_forward.1} parent=1 // pred_check_branch
      %14 = sbr.rel (0) target = $region5
    $region4: #{block_select_forward.1} parent=1 // pred_region
      _
    $region5: #{block_select_forward.1} parent=1 // pred_fallthru
      _
    // Predicated region
    $region6: #{block_select_forward.1} parent=1 // pred_check
      _
    $region7: #{block_select_forward.1} parent=1 // pred_check_branch
      %16 = sbr.rel (0) target = $region9
    $region8: #{block_select_forward.1} parent=1 // pred_region
      %18 = vsyncadd [#allocation3], 0
      %s19 = sshll.u32 %s1, 4
      %s20 = int_to_ptr.hbm [resolvable:$true] %s19
      %s21 = sshll.u32 [#allocation2], 4
      %s22 = int_to_ptr.vmem [resolvable:$true] %s21
      %27 = dma.hbm_to_vmem [thread:$0]  %s20, 4096, %s22, [#allocation3], 128, 128, 8
    $region9: #{block_select_forward.1} parent=1 // pred_fallthru
      _
    // Predicated region
    $region10: #{block_select_forward.1} parent=1 // pred_check
      _
    $region11: #{block_select_forward.1} parent=1 // pred_check_branch
      %29 = sbr.rel (0) target = $region13
    $region12: #{block_select_forward.1} parent=1 // pred_region
      _
    $region13: #{block_select_forward.1} parent=1 // pred_fallthru
      _
    // Predicated region
    $region14: #{block_select_forward.1} parent=1 // pred_check
      _
    $region15: #{block_select_forward.1} parent=1 // pred_check_branch
      %31 = sbr.rel (0) target = $region17
    $region16: #{block_select_forward.1} parent=1 // pred_region
      %33 = vsyncadd [#allocation5], 0
      %s34 = sshll.u32 %s3, 4
      %s35 = int_to_ptr.hbm [resolvable:$true] %s34
      %s36 = sshll.u32 [#allocation4], 4
      %s37 = int_to_ptr.vmem [resolvable:$true] %s36
      %42 = dma.hbm_to_vmem [thread:$0]  %s35, 2048, %s37, [#allocation5], 64, 64, 4
    $region17: #{block_select_forward.1} parent=1 // pred_fallthru
      _
    // Predicated region
    $region18: #{block_select_forward.1} parent=1 // pred_check
      _
    $region19: #{block_select_forward.1} parent=1 // pred_check_branch
      %44 = sbr.rel (0) target = $region21
    $region20: #{block_select_forward.1} parent=1 // pred_region
      _
    $region21: #{block_select_forward.1} parent=1 // pred_fallthru
      _
    // Predicated region
    $region22: #{block_select_forward.1} parent=1 // pred_check
      _
    $region23: #{block_select_forward.1} parent=1 // pred_check_branch
      %46 = sbr.rel (0) target = $region25
    $region24: #{block_select_forward.1} parent=1 // pred_region
      _
    $region25: #{block_select_forward.1} parent=1 // pred_fallthru
      _
    // Predicated region
    $region26: #{block_select_forward.1} parent=1 // pred_check
      _
    $region27: #{block_select_forward.1} parent=1 // pred_check_branch
      %48 = sbr.rel (0) target = $region29
    $region28: #{block_select_forward.1} parent=1 // pred_region
      %50 = dma.done [#allocation3], 4096
    $region29: #{block_select_forward.1} parent=1 // pred_fallthru
      _
    // Predicated region
    $region30: #{block_select_forward.1} parent=1 // pred_check
      _
    $region31: #{block_select_forward.1} parent=1 // pred_check_branch
      %52 = sbr.rel (0) target = $region33
    $region32: #{block_select_forward.1} parent=1 // pred_region
      %54 = dma.done [#allocation5], 2048
    $region33: #{block_select_forward.1} parent=1 // pred_fallthru
      _
    %v57 = vld [vmem:[%s0] sm:$0xff]
    %v58 = vld [vmem:[%s0 + $0x8] sm:$0xff]
    %v59 = vld [vmem:[%s0 + $0x10] sm:$0xff]
    %v60 = vld [vmem:[%s0 + $0x18] sm:$0xff]
    %v61 = vld [vmem:[#allocation2] sm:$0xff]
    %v62 = vld [vmem:[#allocation2 + $0x8] sm:$0xff]
    %v63 = vld [vmem:[#allocation2 + $0x10] sm:$0xff]
    %v64 = vld [vmem:[#allocation2 + $0x18] sm:$0xff]
    %v65 = vld [vmem:[#allocation2 + $0x20] sm:$0xff]
    %v66 = vld [vmem:[#allocation2 + $0x28] sm:$0xff]
    %v67 = vld [vmem:[#allocation2 + $0x30] sm:$0xff]
    %v68 = vld [vmem:[#allocation2 + $0x38] sm:$0xff]
    %v69 = vld [vmem:[#allocation2 + $0x40] sm:$0xff]
    %v70 = vld [vmem:[#allocation2 + $0x48] sm:$0xff]
    %v71 = vld [vmem:[#allocation2 + $0x50] sm:$0xff]
    %v72 = vld [vmem:[#allocation2 + $0x58] sm:$0xff]
    %v73 = vld [vmem:[#allocation2 + $0x60] sm:$0xff]
    %v74 = vld [vmem:[#allocation2 + $0x68] sm:$0xff]
    %v75 = vld [vmem:[#allocation2 + $0x70] sm:$0xff]
    %v76 = vld [vmem:[#allocation2 + $0x78] sm:$0xff]
    %v77 = vld [vmem:[#allocation2 + $0x80] sm:$0xff]
    %v78 = vld [vmem:[#allocation2 + $0x88] sm:$0xff]
    %v79 = vld [vmem:[#allocation2 + $0x90] sm:$0xff]
    %v80 = vld [vmem:[#allocation2 + $0x98] sm:$0xff]
    %v81 = vld [vmem:[#allocation2 + $0xa0] sm:$0xff]
    %v82 = vld [vmem:[#allocation2 + $0xa8] sm:$0xff]
    %v83 = vld [vmem:[#allocation2 + $0xb0] sm:$0xff]
    %v84 = vld [vmem:[#allocation2 + $0xb8] sm:$0xff]
    %v85 = vld [vmem:[#allocation2 + $0xc0] sm:$0xff]
    %v86 = vld [vmem:[#allocation2 + $0xc8] sm:$0xff]
    %v87 = vld [vmem:[#allocation2 + $0xd0] sm:$0xff]
    %v88 = vld [vmem:[#allocation2 + $0xd8] sm:$0xff]
    %v89 = vld [vmem:[#allocation2 + $0xe0] sm:$0xff]
    %v90 = vld [vmem:[#allocation2 + $0xe8] sm:$0xff]
    %v91 = vld [vmem:[#allocation2 + $0xf0] sm:$0xff]
    %v92 = vld [vmem:[#allocation2 + $0xf8] sm:$0xff]
    %v93 = vld [vmem:[%s2] sm:$0x3]
    %v95 = vperm.slane %v93, 0
    %v96 = vperm.slane %v93, 1
    %v103 = vunpack.c.l.b16 %v57
    %v104 = vunpack.c.h.b16 %v57
    %v105 = vunpack.c.l.b16 %v58
    %v106 = vunpack.c.h.b16 %v58
    %v107 = vunpack.c.l.b16 %v59
    %v108 = vunpack.c.h.b16 %v59
    %v109 = vunpack.c.l.b16 %v60
    %v110 = vunpack.c.h.b16 %v60
    %v111 = vpack.c.b16 %v105, %v103
    %v112 = vpack.c.b16 %v106, %v104
    %v113 = vpack.c.b16 %v109, %v107
    %v114 = vpack.c.b16 %v110, %v108
    %v151 = vunpack.c.l.b16 %v61
    %v152 = vunpack.c.h.b16 %v61
    %v153 = vunpack.c.l.b16 %v62
    %v154 = vunpack.c.h.b16 %v62
    %v155 = vunpack.c.l.b16 %v63
    %v156 = vunpack.c.h.b16 %v63
    %v157 = vunpack.c.l.b16 %v64
    %v158 = vunpack.c.h.b16 %v64
    %v159 = vunpack.c.l.b16 %v65
    %v160 = vunpack.c.h.b16 %v65
    %v161 = vunpack.c.l.b16 %v66
    %v162 = vunpack.c.h.b16 %v66
    %v163 = vunpack.c.l.b16 %v67
    %v164 = vunpack.c.h.b16 %v67
    %v165 = vunpack.c.l.b16 %v68
    %v166 = vunpack.c.h.b16 %v68
    %v167 = vunpack.c.l.b16 %v69
    %v168 = vunpack.c.h.b16 %v69
    %v169 = vunpack.c.l.b16 %v70
    %v170 = vunpack.c.h.b16 %v70
    %v171 = vunpack.c.l.b16 %v71
    %v172 = vunpack.c.h.b16 %v71
    %v173 = vunpack.c.l.b16 %v72
    %v174 = vunpack.c.h.b16 %v72
    %v175 = vunpack.c.l.b16 %v73
    %v176 = vunpack.c.h.b16 %v73
    %v177 = vunpack.c.l.b16 %v74
    %v178 = vunpack.c.h.b16 %v74
    %v179 = vunpack.c.l.b16 %v75
    %v180 = vunpack.c.h.b16 %v75
    %v181 = vunpack.c.l.b16 %v76
    %v182 = vunpack.c.h.b16 %v76
    %v183 = vunpack.c.l.b16 %v77
    %v184 = vunpack.c.h.b16 %v77
    %v185 = vunpack.c.l.b16 %v78
    %v186 = vunpack.c.h.b16 %v78
    %v187 = vunpack.c.l.b16 %v79
    %v188 = vunpack.c.h.b16 %v79
    %v189 = vunpack.c.l.b16 %v80
    %v190 = vunpack.c.h.b16 %v80
    %v191 = vunpack.c.l.b16 %v81
    %v192 = vunpack.c.h.b16 %v81
    %v193 = vunpack.c.l.b16 %v82
    %v194 = vunpack.c.h.b16 %v82
    %v195 = vunpack.c.l.b16 %v83
    %v196 = vunpack.c.h.b16 %v83
    %v197 = vunpack.c.l.b16 %v84
    %v198 = vunpack.c.h.b16 %v84
    %v199 = vunpack.c.l.b16 %v85
    %v200 = vunpack.c.h.b16 %v85
    %v201 = vunpack.c.l.b16 %v86
    %v202 = vunpack.c.h.b16 %v86
    %v203 = vunpack.c.l.b16 %v87
    %v204 = vunpack.c.h.b16 %v87
    %v205 = vunpack.c.l.b16 %v88
    %v206 = vunpack.c.h.b16 %v88
    %v207 = vunpack.c.l.b16 %v89
    %v208 = vunpack.c.h.b16 %v89
    %v209 = vunpack.c.l.b16 %v90
    %v210 = vunpack.c.h.b16 %v90
    %v211 = vunpack.c.l.b16 %v91
    %v212 = vunpack.c.h.b16 %v91
    %v213 = vunpack.c.l.b16 %v92
    %v214 = vunpack.c.h.b16 %v92
    %v215 = vpack.c.b16 %v153, %v151
    %v216 = vpack.c.b16 %v154, %v152
    %v217 = vpack.c.b16 %v157, %v155
    %v218 = vpack.c.b16 %v158, %v156
    %v219 = vpack.c.b16 %v161, %v159
    %v220 = vpack.c.b16 %v162, %v160
    %v221 = vpack.c.b16 %v165, %v163
    %v222 = vpack.c.b16 %v166, %v164
    %v223 = vpack.c.b16 %v169, %v167
    %v224 = vpack.c.b16 %v170, %v168
    %v225 = vpack.c.b16 %v173, %v171
    %v226 = vpack.c.b16 %v174, %v172
    %v227 = vpack.c.b16 %v177, %v175
    %v228 = vpack.c.b16 %v178, %v176
    %v229 = vpack.c.b16 %v181, %v179
    %v230 = vpack.c.b16 %v182, %v180
    %v231 = vpack.c.b16 %v185, %v183
    %v232 = vpack.c.b16 %v186, %v184
    %v233 = vpack.c.b16 %v189, %v187
    %v234 = vpack.c.b16 %v190, %v188
    %v235 = vpack.c.b16 %v193, %v191
    %v236 = vpack.c.b16 %v194, %v192
    %v237 = vpack.c.b16 %v197, %v195
    %v238 = vpack.c.b16 %v198, %v196
    %v239 = vpack.c.b16 %v201, %v199
    %v240 = vpack.c.b16 %v202, %v200
    %v241 = vpack.c.b16 %v205, %v203
    %v242 = vpack.c.b16 %v206, %v204
    %v243 = vpack.c.b16 %v209, %v207
    %v244 = vpack.c.b16 %v210, %v208
    %v245 = vpack.c.b16 %v213, %v211
    %v246 = vpack.c.b16 %v214, %v212
    %279 = vmatpush.bf16.msra.mxu0 %v229
    %280 = vmatpush.bf16.msra.mxu0 %v227
    %281 = vmatpush.bf16.msra.mxu0 %v225
    %282 = vmatpush.bf16.msra.mxu0 %v223
    %283 = vmatpush.bf16.msra.mxu0 %v221
    %284 = vmatpush.bf16.msra.mxu0 %v219
    %285 = vmatpush.bf16.msra.mxu0 %v217
    %286 = vmatpush.bf16.msra.mxu0 %v215
    %287 = vmatmul.bf16.gmra.mxu0 %v111
    %v288 = vpop.f32.mrf.mxu0
    %v289 = vadd.f32 %v95, %v288
    %v290 = vpop.f32.mrf.mxu0
    %v291 = vadd.f32 %v95, %v290
    %292 = vmatmul.bf16.gmra.mxu0 %v113
    %v293 = vpop.f32.mrf.mxu0
    %v294 = vadd.f32 %v95, %v293
    %v295 = vpop.f32.mrf.mxu0
    %v296 = vadd.f32 %v95, %v295
    %297 = vdwg.mxu0
    %298 = vmatpush.bf16.msra.mxu0 %v245
    %299 = vmatpush.bf16.msra.mxu0 %v243
    %300 = vmatpush.bf16.msra.mxu0 %v241
    %301 = vmatpush.bf16.msra.mxu0 %v239
    %302 = vmatpush.bf16.msra.mxu0 %v237
    %303 = vmatpush.bf16.msra.mxu0 %v235
    %304 = vmatpush.bf16.msra.mxu0 %v233
    %305 = vmatpush.bf16.msra.mxu0 %v231
    %306 = vmatmul.bf16.gmra.mxu0 %v112
    %v307 = vpop.f32.mrf.mxu0
    %v308 = vadd.f32 %v289, %v307
    %v309 = vpop.f32.mrf.mxu0
    %v310 = vadd.f32 %v291, %v309
    %311 = vmatmul.bf16.gmra.mxu0 %v114
    %v312 = vpop.f32.mrf.mxu0
    %v313 = vadd.f32 %v294, %v312
    %v314 = vpop.f32.mrf.mxu0
    %v315 = vadd.f32 %v296, %v314
    %316 = vdwg.mxu0
    %317 = vmatpush.bf16.msra.mxu0 %v230
    %318 = vmatpush.bf16.msra.mxu0 %v228
    %319 = vmatpush.bf16.msra.mxu0 %v226
    %320 = vmatpush.bf16.msra.mxu0 %v224
    %321 = vmatpush.bf16.msra.mxu0 %v222
    %322 = vmatpush.bf16.msra.mxu0 %v220
    %323 = vmatpush.bf16.msra.mxu0 %v218
    %324 = vmatpush.bf16.msra.mxu0 %v216
    %325 = vmatmul.bf16.gmra.mxu0 %v111
    %v326 = vpop.f32.mrf.mxu0
    %v327 = vadd.f32 %v96, %v326
    %v328 = vpop.f32.mrf.mxu0
    %v329 = vadd.f32 %v96, %v328
    %330 = vmatmul.bf16.gmra.mxu0 %v113
    %v331 = vpop.f32.mrf.mxu0
    %v332 = vadd.f32 %v96, %v331
    %v333 = vpop.f32.mrf.mxu0
    %v334 = vadd.f32 %v96, %v333
    %335 = vdwg.mxu0
    %336 = vmatpush.bf16.msra.mxu0 %v246
    %337 = vmatpush.bf16.msra.mxu0 %v244
    %338 = vmatpush.bf16.msra.mxu0 %v242
    %339 = vmatpush.bf16.msra.mxu0 %v240
    %340 = vmatpush.bf16.msra.mxu0 %v238
    %341 = vmatpush.bf16.msra.mxu0 %v236
    %342 = vmatpush.bf16.msra.mxu0 %v234
    %343 = vmatpush.bf16.msra.mxu0 %v232
    %344 = vmatmul.bf16.gmra.mxu0 %v112
    %v345 = vpop.f32.mrf.mxu0
    %v346 = vadd.f32 %v327, %v345
    %v347 = vpop.f32.mrf.mxu0
    %v348 = vadd.f32 %v329, %v347
    %349 = vmatmul.bf16.gmra.mxu0 %v114
    %v350 = vpop.f32.mrf.mxu0
    %v351 = vadd.f32 %v332, %v350
    %v352 = vpop.f32.mrf.mxu0
    %v353 = vadd.f32 %v334, %v352
    %354 = vdwg.mxu0
    %v355 = vmax.f32 %v308, 0.0
    %v356 = vmax.f32 %v346, 0.0
    %v357 = vmax.f32 %v310, 0.0
    %v358 = vmax.f32 %v348, 0.0
    %v359 = vmax.f32 %v313, 0.0
    %v360 = vmax.f32 %v351, 0.0
    %v361 = vmax.f32 %v315, 0.0
    %v362 = vmax.f32 %v353, 0.0
    %v363 = vpack.c.bf16 %v357, %v355
    %v364 = vpack.c.bf16 %v358, %v356
    %v365 = vpack.c.bf16 %v361, %v359
    %v366 = vpack.c.bf16 %v362, %v360
    %v367 = vld [vmem:[#allocation4] sm:$0xf]
    %v368 = vld [vmem:[#allocation4 + $0x4] sm:$0xf]
    %v369 = vld [vmem:[#allocation4 + $0x8] sm:$0xf]
    %v370 = vld [vmem:[#allocation4 + $0xc] sm:$0xf]
    %v371 = vld [vmem:[#allocation4 + $0x10] sm:$0xf]
    %v372 = vld [vmem:[#allocation4 + $0x14] sm:$0xf]
    %v373 = vld [vmem:[#allocation4 + $0x18] sm:$0xf]
    %v374 = vld [vmem:[#allocation4 + $0x1c] sm:$0xf]
    %v375 = vld [vmem:[#allocation4 + $0x20] sm:$0xf]
    %v376 = vld [vmem:[#allocation4 + $0x24] sm:$0xf]
    %v377 = vld [vmem:[#allocation4 + $0x28] sm:$0xf]
    %v378 = vld [vmem:[#allocation4 + $0x2c] sm:$0xf]
    %v379 = vld [vmem:[#allocation4 + $0x30] sm:$0xf]
    %v380 = vld [vmem:[#allocation4 + $0x34] sm:$0xf]
    %v381 = vld [vmem:[#allocation4 + $0x38] sm:$0xf]
    %v382 = vld [vmem:[#allocation4 + $0x3c] sm:$0xf]
    %v383 = vld [vmem:[#allocation4 + $0x40] sm:$0xf]
    %v384 = vld [vmem:[#allocation4 + $0x44] sm:$0xf]
    %v385 = vld [vmem:[#allocation4 + $0x48] sm:$0xf]
    %v386 = vld [vmem:[#allocation4 + $0x4c] sm:$0xf]
    %v387 = vld [vmem:[#allocation4 + $0x50] sm:$0xf]
    %v388 = vld [vmem:[#allocation4 + $0x54] sm:$0xf]
    %v389 = vld [vmem:[#allocation4 + $0x58] sm:$0xf]
    %v390 = vld [vmem:[#allocation4 + $0x5c] sm:$0xf]
    %v391 = vld [vmem:[#allocation4 + $0x60] sm:$0xf]
    %v392 = vld [vmem:[#allocation4 + $0x64] sm:$0xf]
    %v393 = vld [vmem:[#allocation4 + $0x68] sm:$0xf]
    %v394 = vld [vmem:[#allocation4 + $0x6c] sm:$0xf]
    %v395 = vld [vmem:[#allocation4 + $0x70] sm:$0xf]
    %v396 = vld [vmem:[#allocation4 + $0x74] sm:$0xf]
    %v397 = vld [vmem:[#allocation4 + $0x78] sm:$0xf]
    %v398 = vld [vmem:[#allocation4 + $0x7c] sm:$0xf]
    %v399 = vld [vmem:[%s4] sm:$0x1]
    %v401 = vperm.slane %v399, 0
    %v435 = vunpack.c.l.b16 %v367
    %v436 = vunpack.c.l.b16 %v368
    %v437 = vunpack.c.l.b16 %v369
    %v438 = vunpack.c.l.b16 %v370
    %v439 = vunpack.c.l.b16 %v371
    %v440 = vunpack.c.l.b16 %v372
    %v441 = vunpack.c.l.b16 %v373
    %v442 = vunpack.c.l.b16 %v374
    %v443 = vunpack.c.l.b16 %v375
    %v444 = vunpack.c.l.b16 %v376
    %v445 = vunpack.c.l.b16 %v377
    %v446 = vunpack.c.l.b16 %v378
    %v447 = vunpack.c.l.b16 %v379
    %v448 = vunpack.c.l.b16 %v380
    %v449 = vunpack.c.l.b16 %v381
    %v450 = vunpack.c.l.b16 %v382
    %v451 = vunpack.c.l.b16 %v383
    %v452 = vunpack.c.l.b16 %v384
    %v453 = vunpack.c.l.b16 %v385
    %v454 = vunpack.c.l.b16 %v386
    %v455 = vunpack.c.l.b16 %v387
    %v456 = vunpack.c.l.b16 %v388
    %v457 = vunpack.c.l.b16 %v389
    %v458 = vunpack.c.l.b16 %v390
    %v459 = vunpack.c.l.b16 %v391
    %v460 = vunpack.c.l.b16 %v392
    %v461 = vunpack.c.l.b16 %v393
    %v462 = vunpack.c.l.b16 %v394
    %v463 = vunpack.c.l.b16 %v395
    %v464 = vunpack.c.l.b16 %v396
    %v465 = vunpack.c.l.b16 %v397
    %v466 = vunpack.c.l.b16 %v398
    %v467 = vpack.c.b16 %v436, %v435
    %v468 = vpack.c.b16 %v438, %v437
    %v469 = vpack.c.b16 %v440, %v439
    %v470 = vpack.c.b16 %v442, %v441
    %v471 = vpack.c.b16 %v444, %v443
    %v472 = vpack.c.b16 %v446, %v445
    %v473 = vpack.c.b16 %v448, %v447
    %v474 = vpack.c.b16 %v450, %v449
    %v475 = vpack.c.b16 %v452, %v451
    %v476 = vpack.c.b16 %v454, %v453
    %v477 = vpack.c.b16 %v456, %v455
    %v478 = vpack.c.b16 %v458, %v457
    %v479 = vpack.c.b16 %v460, %v459
    %v480 = vpack.c.b16 %v462, %v461
    %v481 = vpack.c.b16 %v464, %v463
    %v482 = vpack.c.b16 %v466, %v465
    %499 = vmatpush.bf16.msra.mxu0 %v474
    %500 = vmatpush.bf16.msra.mxu0 %v473
    %501 = vmatpush.bf16.msra.mxu0 %v472
    %502 = vmatpush.bf16.msra.mxu0 %v471
    %503 = vmatpush.bf16.msra.mxu0 %v470
    %504 = vmatpush.bf16.msra.mxu0 %v469
    %505 = vmatpush.bf16.msra.mxu0 %v468
    %506 = vmatpush.bf16.msra.mxu0 %v467
    %507 = vmatmul.bf16.gmra.mxu0 %v363
    %v508 = vpop.f32.mrf.mxu0
    %v509 = vadd.f32 %v401, %v508
    %v510 = vpop.f32.mrf.mxu0
    %v511 = vadd.f32 %v401, %v510
    %512 = vmatmul.bf16.gmra.mxu0 %v365
    %v513 = vpop.f32.mrf.mxu0
    %v514 = vadd.f32 %v401, %v513
    %v515 = vpop.f32.mrf.mxu0
    %v516 = vadd.f32 %v401, %v515
    %517 = vdwg.mxu0
    %518 = vmatpush.bf16.msra.mxu0 %v482
    %519 = vmatpush.bf16.msra.mxu0 %v481
    %520 = vmatpush.bf16.msra.mxu0 %v480
    %521 = vmatpush.bf16.msra.mxu0 %v479
    %522 = vmatpush.bf16.msra.mxu0 %v478
    %523 = vmatpush.bf16.msra.mxu0 %v477
    %524 = vmatpush.bf16.msra.mxu0 %v476
    %525 = vmatpush.bf16.msra.mxu0 %v475
    %526 = vmatmul.bf16.gmra.mxu0 %v364
    %v527 = vpop.f32.mrf.mxu0
    %v528 = vadd.f32 %v509, %v527
    %v529 = vpop.f32.mrf.mxu0
    %v530 = vadd.f32 %v511, %v529
    %531 = vmatmul.bf16.gmra.mxu0 %v366
    %v532 = vpop.f32.mrf.mxu0
    %v533 = vadd.f32 %v514, %v532
    %v534 = vpop.f32.mrf.mxu0
    %v535 = vadd.f32 %v516, %v534
    %536 = vdwg.mxu0
    %v537 = vld [vmem:[%s5] sm:$0xff]
    %v538 = vld [vmem:[%s5 + $0x8] sm:$0xff]
    %v539 = vld [vmem:[%s5 + $0x10] sm:$0xff]
    %v540 = vld [vmem:[%s5 + $0x18] sm:$0xff]
    %v541 = vadd.f32 %v528, %v537
    %v542 = vadd.f32 %v530, %v538
    %v543 = vadd.f32 %v533, %v539
    %v544 = vadd.f32 %v535, %v540
    %vm545 = vcmp.gt.f32.partialorder %v541, 0.0
    %vm546 = vcmp.gt.f32.partialorder %v542, 0.0
    %vm547 = vcmp.gt.f32.partialorder %v543, 0.0
    %vm548 = vcmp.gt.f32.partialorder %v544, 0.0
    %vm549 = vmpackc.low %vm546, %vm545
    %vm550 = vmpackc.low %vm548, %vm547
    %v551 = vsel %vm549, 16711935, 0
    %v552 = vsel %vm550, 16711935, 0
    %v553 = vpack.c.b8 %v552, %v551
    %vm554 = vnez %v553
    %v555 = vsel %vm554, 16843009, 0
    %v556 = vunpack.c.0.s8 %v555
    %v557 = vunpack.c.1.s8 %v555
    %v558 = vunpack.c.2.s8 %v555
    %v559 = vunpack.c.3.s8 %v555
    %v560 = vpack.c.b16 %v556, %v556
    %v561 = vpack.c.b8 %v560, %v560
    %v562 = vpack.c.b16 %v557, %v557
    %v563 = vpack.c.b8 %v562, %v562
    %v564 = vpack.c.b16 %v558, %v558
    %v565 = vpack.c.b8 %v564, %v564
    %v566 = vpack.c.b16 %v559, %v559
    %v567 = vpack.c.b8 %v566, %v566
    %568 = vst [vmem:[%s6] sm:$0x3] %v561
    %569 = vst [vmem:[%s6 + $0x2] sm:$0x3] %v563
    %570 = vst [vmem:[%s6 + $0x4] sm:$0x3] %v565
    %571 = vst [vmem:[%s6 + $0x6] sm:$0x3] %v567
    // Predicated region
    $region34: #{block_select_forward.1} parent=1 // pred_check
      _
    $region35: #{block_select_forward.1} parent=1 // pred_check_branch
      %573 = sbr.rel (0) target = $region37
    $region36: #{block_select_forward.1} parent=1 // pred_region
      _
    $region37: #{block_select_forward.1} parent=1 // pred_fallthru
      _
    // Predicated region
    $region38: #{block_select_forward.1} parent=1 // pred_check
      _
    $region39: #{block_select_forward.1} parent=1 // pred_check_branch
      %575 = sbr.rel (0) target = $region41
    $region40: #{block_select_forward.1} parent=1 // pred_region
      _
    $region41: #{block_select_forward.1} parent=1 // pred_fallthru
      _
    %576 = vsyncpa [#allocation3], 1
    %577 = vsyncpa [#allocation5], 1

</llo_original>
